<compile_context>
chip_gen: v7x
topology: tpu7x:2x2x1
jax: 0.10.0
libtpu: 0.0.40
codegen_flags: <defaults>
</compile_context>

<pallas_src>
import functools

import jax
import jax.numpy as jnp
from jax import lax
from jax.experimental import pallas as pl
from jax.experimental.pallas import tpu as pltpu


def _conv_block_kernel(c_ref, w_ref, b_ref, o_ref, *, neg_slope):
    """One row-tile grid step.

    c_ref: (1, (th+2)*N, Lp) bf16  overlapping W-padded input window, rows
                                   packed (padded_local_row, image)
    w_ref: (3, Lp, WC)       bf16  banded weights (one slab per kh tap)
    b_ref: (1, WC)           f32   bias replicated over w: lane w*Cout+co -> bias[co]
    o_ref: (th*N, WC)              lane-dense output tile, rows (local_row, image)
    """
    m = o_ref.shape[0]                     # th * N
    n = (c_ref.shape[1] - m) // 2          # N (images folded into the M dim)
    c = c_ref[0]                           # ((th+2)*N, Lp) bf16

    # Three kh taps as sublane-offset slices of the same window; all partials
    # are aligned to output row 0, so they just sum (no halo dots / concats).
    acc = jnp.dot(c[0:m], w_ref[0], preferred_element_type=jnp.float32)
    acc += jnp.dot(c[n:n + m], w_ref[1], preferred_element_type=jnp.float32)
    acc += jnp.dot(c[2 * n:2 * n + m], w_ref[2], preferred_element_type=jnp.float32)

    acc += b_ref[...]                                  # f32 epilogue
    out = jnp.where(acc > 0, acc, neg_slope * acc)     # LeakyReLU(0.2)
    o_ref[...] = out.astype(o_ref.dtype)


def _vmem_budget_and_limit():
    """Generation-aware VMEM sizing (v5e/v6e: 128 MiB physical, v7x: 64 MiB)."""
    try:
        cap = int(pltpu.get_tpu_info().vmem_capacity_bytes)
    except Exception:
        cap = 64 * 1024 * 1024
    budget = int(cap * 0.55)                            # leave Mosaic scratch headroom
    limit = max(min(int(cap * 0.75), 128 * 1024 * 1024), 32 * 1024 * 1024)
    return budget, limit


def _pick_row_tile(H, N, Lp, WC, budget):
    """Largest divisor of H whose per-step footprint fits the budget, preferring
    >= 2 grid steps (v7x megacore) and 8-aligned output sublane dims."""

    def footprint(th):
        return (2 * (th + 2) * N * Lp * 2      # window block, bf16, double-buffered
                + 2 * th * N * WC * 4          # output block, f32, double-buffered
                + 2 * 3 * Lp * WC * 2          # banded weight slab (counted x2)
                + 2 * WC * 4                   # bias
                + 4 * th * N * WC * 4)         # slack: f32 matmul partials / spills

    divs = [d for d in range(1, H + 1) if H % d == 0]
    valid = [d for d in divs if (d * N) % 8 == 0 or d == H]   # out-block sublane rule
    fitting = [d for d in valid if footprint(d) <= budget] or [min(valid)]
    multi = [d for d in fitting if H // d >= 2]               # keep both v7x TCs busy
    return max(multi) if multi else max(fitting)


def _banded_weights(weight, W, Lp):
    """wb[kh][(w+kw)*Cin+ci, w*Cout+co] = weight[co, ci, kh, kw], K-padded to Lp.

    TODO(synk): O(W^2*Cin*Cout) slab with (W+2)/3 FLOP redundancy; for large W add
    a W-tile grid axis / switch to a channel-contraction GEMM and hoist this out of
    the per-call path (precompute once per weight).
    """
    Cout, Cin = weight.shape[0], weight.shape[1]
    L = (W + 2) * Cin
    wk = jnp.transpose(weight, (2, 3, 1, 0)).astype(jnp.float32)      # (kh, kw, ci, co)
    sel = (jnp.arange(W + 2)[None, :, None]
           == (jnp.arange(3)[:, None, None] + jnp.arange(W)[None, None, :]))
    wb = jnp.einsum('xpw,hxio->hpiwo', sel.astype(jnp.float32), wk)   # (3, W+2, Cin, W, Cout)
    wb = wb.reshape(3, L, W * Cout)
    wb = jnp.pad(wb, ((0, 0), (0, Lp - L), (0, 0)))                   # zero K-pad rows
    return wb.astype(jnp.bfloat16)


def conv_block_forward(x_nchw, weight, bias, *, neg_slope=0.2, out_dtype=None):
    """ConvBlock.forward: Conv2d(Cin, Cout, 3, stride=1, pad=1) + LeakyReLU(0.2).

    x_nchw: (N, Cin, H, W), weight: (Cout, Cin, 3, 3), bias: (Cout,)
    returns (N, Cout, H, W) in x dtype (or out_dtype, e.g. bf16, if given).

    TODO(synk): when chaining ConvBlocks, accept/return the packed row layout
    instead of NCHW so the transpose/pad glue is paid once per network.
    """
    N, Cin, H, W = x_nchw.shape
    Cout = weight.shape[0]
    L = (W + 2) * Cin
    Lp = (L + 15) // 16 * 16                 # contraction dim padded for bf16 packing
    WC = W * Cout
    o_dtype = jnp.dtype(out_dtype) if out_dtype is not None else x_nchw.dtype

    budget, vmem_limit = _vmem_budget_and_limit()
    th = _pick_row_tile(H, N, Lp, WC, budget)
    nj = H // th

    # ---- layout glue (~1x input bytes): NCHW -> (H, N, W, Cin), pad W/K/H rows.
    xb = x_nchw.astype(jnp.bfloat16)
    xh = jnp.transpose(xb, (2, 0, 3, 1))                        # (H, N, W, Cin)
    xw = jnp.pad(xh, ((0, 0), (0, 0), (1, 1), (0, 0)))          # (H, N, W+2, Cin)
    rows = xw.reshape(H, N, L)
    rows = jnp.pad(rows, ((1, 1), (0, 0), (0, Lp - L)))         # (H+2, N, Lp), zero edges
    slab = rows.reshape((H + 2) * N, Lp)                        # row index = p*N + n

    # ---- overlapping (th+2)-row windows, one per grid step (folds the halo).
    if nj == 1:
        win = slab[None]                                        # (1, (H+2)*N, Lp)
    else:
        idx = (jnp.arange(nj) * (th * N))[:, None] + jnp.arange((th + 2) * N)[None, :]
        win = slab[idx]                                         # (nj, (th+2)*N, Lp)

    wb = _banded_weights(weight, W, Lp)                         # (3, Lp, WC) bf16
    b2 = jnp.tile(bias.astype(jnp.float32), W).reshape(1, WC)   # lane w*Cout+co -> bias[co]

    kernel = functools.partial(_conv_block_kernel, neg_slope=neg_slope)

    out_rows = pl.pallas_call(
        kernel,
        out_shape=jax.ShapeDtypeStruct((H * N, WC), o_dtype),
        grid_spec=pltpu.PrefetchScalarGridSpec(
            num_scalar_prefetch=0,
            grid=(nj,),
            in_specs=[
                pl.BlockSpec((1, (th + 2) * N, Lp), lambda j: (j, 0, 0)),  # window
                pl.BlockSpec((3, Lp, WC), lambda j: (0, 0, 0)),            # banded weights
                pl.BlockSpec((1, WC), lambda j: (0, 0)),                   # bias
            ],
            out_specs=pl.BlockSpec((th * N, WC), lambda j: (j, 0)),
        ),
        compiler_params=pltpu.CompilerParams(
            dimension_semantics=("parallel",),
            vmem_limit_bytes=vmem_limit,
        ),
    )(win, wb, b2)

    out = out_rows.reshape(H, N, W, Cout)
    return jnp.transpose(out, (1, 3, 0, 2))                     # (N, Cout, H, W)


def _reference(x_nchw, weight, bias, neg_slope=0.2):
    """Pure-JAX f32 reference (lax.conv) for correctness check."""
    y = lax.conv_general_dilated(
        x_nchw, weight,
        window_strides=(1, 1), padding=((1, 1), (1, 1)),
        dimension_numbers=("NCHW", "OIHW", "NCHW"))
    y = y + bias.reshape(1, -1, 1, 1)
    return jnp.where(y > 0, y, neg_slope * y)


if __name__ == "__main__":
    # ConvBlock(ndims=2, in_channels=4, out_channels=8, stride=1)
    N, Cin, Cout, H, W = 2, 4, 8, 16, 16

    key = jax.random.PRNGKey(0)
    kx, kw_, kb = jax.random.split(key, 3)

    x = jax.random.normal(kx, (N, Cin, H, W), dtype=jnp.float32)
    weight = 0.1 * jax.random.normal(kw_, (Cout, Cin, 3, 3), dtype=jnp.float32)
    bias = 0.1 * jax.random.normal(kb, (Cout,), dtype=jnp.float32)

    fwd = jax.jit(conv_block_forward)
    out = jax.block_until_ready(fwd(x, weight, bias))
    ref = jax.block_until_ready(_reference(x, weight, bias))

    assert out.shape == (N, Cout, H, W), out.shape
    err = float(jnp.max(jnp.abs(out - ref)))
    # bf16 MXU operands with f32 accumulation -> tolerance sized for bf16 rounding.
    assert err < 5e-2, f"mismatch vs reference conv: max abs err {err}"

    print("KERNEL_OK")
</pallas_src>

<mosaic_0001>
module attributes {stable_mosaic.version = 11 : i64} {
  func.func @_conv_block_kernel(%arg0: i32, %arg1: memref<1x20x80xbf16, #tpu.memory_space<vmem>>, %arg2: memref<3x80x128xbf16, #tpu.memory_space<vmem>>, %arg3: memref<1x128xf32, #tpu.memory_space<vmem>>, %arg4: memref<16x128xf32, #tpu.memory_space<vmem>>) attributes {dimension_semantics = [#tpu.dimension_semantics<parallel>], iteration_bounds = array<i64: 2>, scalar_prefetch = 0 : i64, scratch_operands = 0 : i64, tpu.core_type = #tpu.core_type<tc>, window_params = [{transform_indices = @transform_0, window_bounds = array<i64: 1, 20, 80>}, {pipeline_mode = #tpu.pipeline_mode<synchronous>, transform_indices = @transform_1, window_bounds = array<i64: 3, 80, 128>}, {pipeline_mode = #tpu.pipeline_mode<synchronous>, transform_indices = @transform_2, window_bounds = array<i64: 1, 128>}, {transform_indices = @transform_3, window_bounds = array<i64: 16, 128>}]} {
    %c0 = arith.constant 0 : index
    %c0_0 = arith.constant 0 : index
    %c0_1 = arith.constant 0 : index
    %0 = vector.load %arg1[%c0, %c0_0, %c0_1] : memref<1x20x80xbf16, #tpu.memory_space<vmem>>, vector<1x20x80xbf16>
    %1 = vector.shape_cast %0 : vector<1x20x80xbf16> to vector<20x80xbf16>
    %2 = vector.extract_strided_slice %1 {offsets = [0, 0], sizes = [16, 80], strides = [1, 1]} : vector<20x80xbf16> to vector<16x80xbf16>
    %c0_2 = arith.constant 0 : index
    %c0_3 = arith.constant 0 : index
    %c0_4 = arith.constant 0 : index
    %3 = vector.load %arg2[%c0_2, %c0_3, %c0_4] : memref<3x80x128xbf16, #tpu.memory_space<vmem>>, vector<1x80x128xbf16>
    %4 = vector.shape_cast %3 : vector<1x80x128xbf16> to vector<80x128xbf16>
    %cst = arith.constant dense<0.000000e+00> : vector<16x128xf32>
    %5 = tpu.matmul %2, %4, %cst {dimension_numbers = #tpu.dot_dimension_numbers<[1], [0], [0], [1], [0, 0, 1, 1], [], []>} : vector<16x80xbf16>, vector<80x128xbf16>, vector<16x128xf32> -> vector<16x128xf32>
    %6 = vector.extract_strided_slice %1 {offsets = [2, 0], sizes = [16, 80], strides = [1, 1]} : vector<20x80xbf16> to vector<16x80xbf16>
    %c1 = arith.constant 1 : index
    %c0_5 = arith.constant 0 : index
    %c0_6 = arith.constant 0 : index
    %7 = vector.load %arg2[%c1, %c0_5, %c0_6] : memref<3x80x128xbf16, #tpu.memory_space<vmem>>, vector<1x80x128xbf16>
    %8 = vector.shape_cast %7 : vector<1x80x128xbf16> to vector<80x128xbf16>
    %cst_7 = arith.constant dense<0.000000e+00> : vector<16x128xf32>
    %9 = tpu.matmul %6, %8, %cst_7 {dimension_numbers = #tpu.dot_dimension_numbers<[1], [0], [0], [1], [0, 0, 1, 1], [], []>} : vector<16x80xbf16>, vector<80x128xbf16>, vector<16x128xf32> -> vector<16x128xf32>
    %10 = arith.addf %5, %9 : vector<16x128xf32>
    %11 = vector.extract_strided_slice %1 {offsets = [4, 0], sizes = [16, 80], strides = [1, 1]} : vector<20x80xbf16> to vector<16x80xbf16>
    %c2 = arith.constant 2 : index
    %c0_8 = arith.constant 0 : index
    %c0_9 = arith.constant 0 : index
    %12 = vector.load %arg2[%c2, %c0_8, %c0_9] : memref<3x80x128xbf16, #tpu.memory_space<vmem>>, vector<1x80x128xbf16>
    %13 = vector.shape_cast %12 : vector<1x80x128xbf16> to vector<80x128xbf16>
    %cst_10 = arith.constant dense<0.000000e+00> : vector<16x128xf32>
    %14 = tpu.matmul %11, %13, %cst_10 {dimension_numbers = #tpu.dot_dimension_numbers<[1], [0], [0], [1], [0, 0, 1, 1], [], []>} : vector<16x80xbf16>, vector<80x128xbf16>, vector<16x128xf32> -> vector<16x128xf32>
    %15 = arith.addf %10, %14 : vector<16x128xf32>
    %c0_11 = arith.constant 0 : index
    %c0_12 = arith.constant 0 : index
    %16 = vector.load %arg3[%c0_11, %c0_12] : memref<1x128xf32, #tpu.memory_space<vmem>>, vector<1x128xf32>
    %17 = vector.broadcast %16 : vector<1x128xf32> to vector<16x128xf32>
    %18 = arith.addf %15, %17 : vector<16x128xf32>
    %cst_13 = arith.constant 0.000000e+00 : f32
    %19 = vector.broadcast %cst_13 : f32 to vector<16x128xf32>
    %20 = arith.cmpf ogt, %18, %19 : vector<16x128xf32>
    %cst_14 = arith.constant 2.000000e-01 : f32
    %21 = vector.broadcast %cst_14 : f32 to vector<16x128xf32>
    %22 = arith.mulf %21, %18 : vector<16x128xf32>
    %23 = arith.select %20, %18, %22 : vector<16x128xi1>, vector<16x128xf32>
    %c0_15 = arith.constant 0 : index
    %c0_16 = arith.constant 0 : index
    %24 = vector.load %arg4[%c0_15, %c0_16] : memref<16x128xf32, #tpu.memory_space<vmem>>, vector<16x128xf32>
    tpu.vector_store %arg4[%c0_15, %c0_16], %23 {strides = array<i32>} : memref<16x128xf32, #tpu.memory_space<vmem>>, vector<16x128xf32>,
    return
  }
  func.func @transform_0(%arg0: i32) -> (i32, i32, i32) {
    %c0_i32 = arith.constant 0 : i32
    %c0_i32_0 = arith.constant 0 : i32
    %c0_i32_1 = arith.constant 0 : i32
    return %arg0, %c0_i32, %c0_i32_0 : i32, i32, i32
  }
  func.func @transform_1(%arg0: i32) -> (i32, i32, i32) {
    %c0_i32 = arith.constant 0 : i32
    %c0_i32_0 = arith.constant 0 : i32
    %c0_i32_1 = arith.constant 0 : i32
    %c0_i32_2 = arith.constant 0 : i32
    return %c0_i32, %c0_i32_0, %c0_i32_1 : i32, i32, i32
  }
  func.func @transform_2(%arg0: i32) -> (i32, i32) {
    %c0_i32 = arith.constant 0 : i32
    %c0_i32_0 = arith.constant 0 : i32
    %c0_i32_1 = arith.constant 0 : i32
    return %c0_i32, %c0_i32_0 : i32, i32
  }
  func.func @transform_3(%arg0: i32) -> (i32, i32) {
    %c0_i32 = arith.constant 0 : i32
    %c0_i32_0 = arith.constant 0 : i32
    return %arg0, %c0_i32 : i32, i32
  }
}

</mosaic_0001>

<llo_original>
// kernel: tile.8
$region0: #{tile.8}
  #allocation0 [shape = 's32[1]{0}', space=sflag, size = 0x4, scoped, tag = 'scoped memory for tile.8']
  %s0 = inlined_call_operand.vmem [shape: f32[8], index: 0, kind: input, shape index: {}]
  %s1 = inlined_call_operand.vmem [shape: f32[16,8], index: 1, kind: output, shape index: {}]
  // Predicated region
  $region2: #{tile.8} parent=0 // pred_check
    _
  $region3: #{tile.8} parent=0 // pred_check_branch
    %3 = sbr.rel (0) target = $region5
  $region4: #{tile.8} parent=0 // pred_region
    _
  $region5: #{tile.8} parent=0 // pred_fallthru
    _
  %v4 = vld [vmem:[%s0] ss:$0 sm:$0xff]
  %5 = vst [vmem:[%s1] sm:$0xff] %v4
  %s6 = scalar_lea.vmem %s1, 8
  %7 = vst [vmem:[%s6] sm:$0xff] %v4

// kernel: tile.9
$region0: #{tile.9}
  %s0 = inlined_call_operand.vmem [shape: f32[16,8], index: 0, kind: input, shape index: {}]
  %s1 = inlined_call_operand.vmem [shape: f32[1,128], index: 1, kind: output, shape index: {}]
  $region1: #{tile.9} parent=0
    #allocation0 [shape = 'u8[4096]{0}', space=vmem, size = 0x1000, scoped, tag = 'scoped mem for output reshape']
    %v2 = vld [vmem:[%s0] sm:$0x1]
    %vm3 = vcmask 64512
    %4 = vst.msk [vmem:[#allocation0] sm:$0x1] %vm3, %v2
    %s5 = scalar_lea.vmem %s0, 15
    %v6 = vld [vmem:[%s5] sm:$0x1]
    %7 = vrot.lane.b32.xlu0 %v6, 120
    %v8 = vpop.permute.xlu0 %7
    %vm9 = vcmask 1048512
    %10 = vst.msk [vmem:[#allocation0] sm:$0x1] %vm9, %v8
    %s11 = scalar_lea.vmem %s0, 14
    %v12 = vld [vmem:[%s11] sm:$0x1]
    %13 = vrot.lane.b32.xlu0 %v12, 112
    %v14 = vpop.permute.xlu0 %13
    %vm15 = vcmask 982912
    %16 = vst.msk [vmem:[#allocation0] sm:$0x1] %vm15, %v14
    %s17 = scalar_lea.vmem %s0, 13
    %v18 = vld [vmem:[%s17] sm:$0x1]
    %19 = vrot.lane.b32.xlu0 %v18, 104
    %v20 = vpop.permute.xlu0 %19
    %vm21 = vcmask 917312
    %22 = vst.msk [vmem:[#allocation0] sm:$0x1] %vm21, %v20
    %s23 = scalar_lea.vmem %s0, 12
    %v24 = vld [vmem:[%s23] sm:$0x1]
    %25 = vrot.lane.b32.xlu0 %v24, 96
    %v26 = vpop.permute.xlu0 %25
    %vm27 = vcmask 851712
    %28 = vst.msk [vmem:[#allocation0] sm:$0x1] %vm27, %v26
    %s29 = scalar_lea.vmem %s0, 11
    %v30 = vld [vmem:[%s29] sm:$0x1]
    %31 = vrot.lane.b32.xlu0 %v30, 88
    %v32 = vpop.permute.xlu0 %31
    %vm33 = vcmask 786112
    %34 = vst.msk [vmem:[#allocation0] sm:$0x1] %vm33, %v32
    %s35 = scalar_lea.vmem %s0, 10
    %v36 = vld [vmem:[%s35] sm:$0x1]
    %37 = vrot.lane.b32.xlu0 %v36, 80
    %v38 = vpop.permute.xlu0 %37
    %vm39 = vcmask 720512
    %40 = vst.msk [vmem:[#allocation0] sm:$0x1] %vm39, %v38
    %s41 = scalar_lea.vmem %s0, 9
    %v42 = vld [vmem:[%s41] sm:$0x1]
    %43 = vrot.lane.b32.xlu0 %v42, 72
    %v44 = vpop.permute.xlu0 %43
    %vm45 = vcmask 654912
    %46 = vst.msk [vmem:[#allocation0] sm:$0x1] %vm45, %v44
    %s47 = scalar_lea.vmem %s0, 8
    %v48 = vld [vmem:[%s47] sm:$0x1]
    %49 = vrot.lane.b32.xlu0 %v48, 64
    %v50 = vpop.permute.xlu0 %49
    %vm51 = vcmask 589312
    %52 = vst.msk [vmem:[#allocation0] sm:$0x1] %vm51, %v50
    %s53 = scalar_lea.vmem %s0, 7
    %v54 = vld [vmem:[%s53] sm:$0x1]
    %55 = vrot.lane.b32.xlu0 %v54, 56
    %v56 = vpop.permute.xlu0 %55
    %vm57 = vcmask 523712
    %58 = vst.msk [vmem:[#allocation0] sm:$0x1] %vm57, %v56
    %s59 = scalar_lea.vmem %s0, 6
    %v60 = vld [vmem:[%s59] sm:$0x1]
    %61 = vrot.lane.b32.xlu0 %v60, 48
    %v62 = vpop.permute.xlu0 %61
    %vm63 = vcmask 458112
    %64 = vst.msk [vmem:[#allocation0] sm:$0x1] %vm63, %v62
    %s65 = scalar_lea.vmem %s0, 5
    %v66 = vld [vmem:[%s65] sm:$0x1]
    %67 = vrot.lane.b32.xlu0 %v66, 40
    %v68 = vpop.permute.xlu0 %67
    %vm69 = vcmask 392512
    %70 = vst.msk [vmem:[#allocation0] sm:$0x1] %vm69, %v68
    %s71 = scalar_lea.vmem %s0, 4
    %v72 = vld [vmem:[%s71] sm:$0x1]
    %73 = vrot.lane.b32.xlu0 %v72, 32
    %v74 = vpop.permute.xlu0 %73
    %vm75 = vcmask 326912
    %76 = vst.msk [vmem:[#allocation0] sm:$0x1] %vm75, %v74
    %s77 = scalar_lea.vmem %s0, 3
    %v78 = vld [vmem:[%s77] sm:$0x1]
    %79 = vrot.lane.b32.xlu0 %v78, 24
    %v80 = vpop.permute.xlu0 %79
    %vm81 = vcmask 261312
    %82 = vst.msk [vmem:[#allocation0] sm:$0x1] %vm81, %v80
    %s83 = scalar_lea.vmem %s0, 2
    %v84 = vld [vmem:[%s83] sm:$0x1]
    %85 = vrot.lane.b32.xlu0 %v84, 16
    %v86 = vpop.permute.xlu0 %85
    %vm87 = vcmask 195712
    %88 = vst.msk [vmem:[#allocation0] sm:$0x1] %vm87, %v86
    %s89 = scalar_lea.vmem %s0, 1
    %v90 = vld [vmem:[%s89] sm:$0x1]
    %91 = vrot.lane.b32.xlu0 %v90, 8
    %v92 = vpop.permute.xlu0 %91
    %vm93 = vcmask 130112
    %94 = vst.msk [vmem:[#allocation0] sm:$0x1] %vm93, %v92
    %s96 = sshllo.u32 0, 1
    %v98 = vld [vmem:[#allocation0] sm:%s96]
    %s99 = sshllo.u32 0, 1
    %100 = vst [vmem:[%s1] sm:%s99] %v98

// kernel: conv_block_forward.1
$region0: #{conv_block_forward.1}
  #allocation0 [shape = 'u32[]', space=smem, size = 0x4, offset = 0x4, fixed_abs, tag = 'smem constant byte address 0x4 - core index']
  #allocation1 [shape = 'u32[144,128]{1,0:T(1,128)}', space=vmem, size = 0x12000, scoped, tag = 'internal scratch']
  %s0 = inlined_call_operand.vmem [shape: bf16[2,20,80], index: 0, kind: input, shape index: {}]
  %s1 = inlined_call_operand.vmem [shape: bf16[3,80,128], index: 1, kind: input, shape index: {}]
  %s2 = inlined_call_operand.vmem [shape: f32[1,128], index: 2, kind: input, shape index: {}]
  %s3 = inlined_call_operand.vmem [shape: f32[32,128], index: 3, kind: output, shape index: {}]
  %s4 = sld [smem:[#allocation0]]
  $region45: #{conv_block_forward.1} parent=0
    _
  %s6 = ssub.s32 1, %s4
  %s7 = scalar_select 0, %s6, %s4
  loop: start=0, step=1, limit=4
  $region2: #{conv_block_forward.1} parent=0 // loop_pre_header
    _
  $region3: #{conv_block_forward.1} parent=0 // loop_header
    %s9 = sphi 0, %s13
    %p10 = scmp.ge.s32.totalorder %s9, 4
    %s19 = sphi 0, %s21
    %s22 = sphi 0, %s19
    %s23 = sphi 0, %s22
    %s39 = sphi 0, %s23
    %s43 = sphi 0, %s43
    %s45 = sphi 0, %s43
    %s46 = sphi 0, %s45
    %s60 = sphi 0, %s46
    %s64 = sphi 0, %s64
    %s66 = sphi 0, %s64
    %s67 = sphi 0, %s66
    %s81 = sphi 0, %s67
    %s87 = sphi 0, %s89
    %s90 = sphi 0, %s87
    %s91 = sphi 0, %s90
    %s107 = sphi 0, %s91
  $region4: #{conv_block_forward.1} parent=0 // loop_header_branch
    %12 = sbr.rel (%p10) target = $region8
  $region5: #{conv_block_forward.1} parent=0 // loop_body
    %s14 = ssub.s32 %s9, 1
    %s15 = ssub.s32 %s9, 2
    %s16 = sadd.s32 %s9, 1
    %s17 = ssub.s32 %s9, %s16
    %p18 = scmp.eq.s32.totalorder %s17, 0
    %s20 = sadd.s32 %s19, 1
    %s21 = scalar_select %p18, %s19, %s20
    %p24 = pneg %p18
    %p25 = scmp.eq.s32.totalorder %s9, 1
    %p26 = por %p24, %p25
    %p27 = scmp.ne.s32.totalorder %s19, %s22
    %p28 = scmp.eq.s32.totalorder %s9, 0
    %p29 = por %p27, %p28
    %p30 = scmp.ne.s32.totalorder %s19, %s22
    %p31 = scmp.eq.s32.totalorder %s14, 1
    %p32 = por %p30, %p31
    %p33 = scmp.ne.s32.totalorder %s22, %s23
    %p34 = scmp.eq.s32.totalorder %s14, 0
    %p35 = por %p33, %p34
    %p36 = scmp.ne.s32.totalorder %s22, %s23
    %p37 = scmp.eq.s32.totalorder %s15, 1
    %p38 = por %p36, %p37
    %p40 = scmp.ne.s32.totalorder %s23, %s39
    %p41 = scmp.eq.s32.totalorder %s15, 0
    %p42 = por %p40, %p41
    %s44 = sadd.s32 %s43, 1
    %p47 = scmp.eq.s32.totalorder %s9, 1
    %p48 = scmp.ne.s32.totalorder %s43, %s45
    %p49 = scmp.eq.s32.totalorder %s9, 0
    %p50 = por %p48, %p49
    %p51 = scmp.ne.s32.totalorder %s43, %s45
    %p52 = scmp.eq.s32.totalorder %s14, 1
    %p53 = por %p51, %p52
    %p54 = scmp.ne.s32.totalorder %s45, %s46
    %p55 = scmp.eq.s32.totalorder %s14, 0
    %p56 = por %p54, %p55
    %p57 = scmp.ne.s32.totalorder %s45, %s46
    %p58 = scmp.eq.s32.totalorder %s15, 1
    %p59 = por %p57, %p58
    %p61 = scmp.ne.s32.totalorder %s46, %s60
    %p62 = scmp.eq.s32.totalorder %s15, 0
    %p63 = por %p61, %p62
    %s65 = sadd.s32 %s64, 1
    %p68 = scmp.eq.s32.totalorder %s9, 1
    %p69 = scmp.ne.s32.totalorder %s64, %s66
    %p70 = scmp.eq.s32.totalorder %s9, 0
    %p71 = por %p69, %p70
    %p72 = scmp.ne.s32.totalorder %s64, %s66
    %p73 = scmp.eq.s32.totalorder %s14, 1
    %p74 = por %p72, %p73
    %p75 = scmp.ne.s32.totalorder %s66, %s67
    %p76 = scmp.eq.s32.totalorder %s14, 0
    %p77 = por %p75, %p76
    %p78 = scmp.ne.s32.totalorder %s66, %s67
    %p79 = scmp.eq.s32.totalorder %s15, 1
    %p80 = por %p78, %p79
    %p82 = scmp.ne.s32.totalorder %s67, %s81
    %p83 = scmp.eq.s32.totalorder %s15, 0
    %p84 = por %p82, %p83
    %s85 = ssub.s32 %s9, %s16
    %p86 = scmp.eq.s32.totalorder %s85, 0
    %s88 = sadd.s32 %s87, 1
    %s89 = scalar_select %p86, %s87, %s88
    %p92 = pneg %p86
    %p93 = scmp.eq.s32.totalorder %s9, 1
    %p94 = por %p92, %p93
    %p95 = scmp.ne.s32.totalorder %s87, %s90
    %p96 = scmp.eq.s32.totalorder %s9, 0
    %p97 = por %p95, %p96
    %p98 = scmp.ne.s32.totalorder %s87, %s90
    %p99 = scmp.eq.s32.totalorder %s14, 1
    %p100 = por %p98, %p99
    %p101 = scmp.ne.s32.totalorder %s90, %s91
    %p102 = scmp.eq.s32.totalorder %s14, 0
    %p103 = por %p101, %p102
    %p104 = scmp.ne.s32.totalorder %s90, %s91
    %p105 = scmp.eq.s32.totalorder %s15, 1
    %p106 = por %p104, %p105
    %p108 = scmp.ne.s32.totalorder %s91, %s107
    %p109 = scmp.eq.s32.totalorder %s15, 0
    %p110 = por %p108, %p109
    %p111 = scmp.le.s32.totalorder 1, %s9
    %p112 = scmp.lt.s32.totalorder %s9, 3
    %p113 = pnand %p111, %p112
    %p114 = pneg %p113
    // Predicated region
    $region9: #{conv_block_forward.1} parent=5 // pred_check
      _
    $region10: #{conv_block_forward.1} parent=5 // pred_check_branch
      %116 = sbr.rel (%p113) target = $region12
    $region11: #{conv_block_forward.1} parent=5 // pred_region
      %s117 = ssub.s32 %s9, 1
      // Predicated region
      $region13: #{conv_block_forward.1} parent=11 // pred_check
        %p118 = pneg %p56
      $region14: #{conv_block_forward.1} parent=11 // pred_check_branch
        %120 = sbr.rel (%p118) target = $region16
      $region15: #{conv_block_forward.1} parent=11 // pred_region
        _
      $region16: #{conv_block_forward.1} parent=11 // pred_fallthru
        _
      // Predicated region
      $region17: #{conv_block_forward.1} parent=11 // pred_check
        %p121 = pneg %p77
      $region18: #{conv_block_forward.1} parent=11 // pred_check_branch
        %123 = sbr.rel (%p121) target = $region20
      $region19: #{conv_block_forward.1} parent=11 // pred_region
        _
      $region20: #{conv_block_forward.1} parent=11 // pred_fallthru
        _
    $region12: #{conv_block_forward.1} parent=5 // pred_fallthru
      _
    %p124 = scmp.lt.s32.totalorder %s9, 2
    // Predicated region
    $region21: #{conv_block_forward.1} parent=5 // pred_check
      %p125 = pneg %p124
    $region22: #{conv_block_forward.1} parent=5 // pred_check_branch
      %127 = sbr.rel (%p125) target = $region24
    $region23: #{conv_block_forward.1} parent=5 // pred_region
      // Predicated region
      $region25: #{conv_block_forward.1} parent=23 // pred_check
        %p128 = pneg %p29
      $region26: #{conv_block_forward.1} parent=23 // pred_check_branch
        %130 = sbr.rel (%p128) target = $region28
      $region27: #{conv_block_forward.1} parent=23 // pred_region
        %p131 = scmp.lt.s32.totalorder %s9, 1
        %s132 = scalar_select %p131, %s9, 1
        %s133 = smul.addr %s132, 3
        %s134 = smul.addr %s133, 4
        %s135 = scalar_lea.vmem %s0, %s134
      $region28: #{conv_block_forward.1} parent=23 // pred_fallthru
        _
    $region24: #{conv_block_forward.1} parent=5 // pred_fallthru
      _
    %p136 = scmp.le.s32.totalorder 1, %s9
    %p137 = scmp.lt.s32.totalorder %s9, 3
    %p138 = pnand %p136, %p137
    %p139 = pneg %p138
    // Predicated region
    $region29: #{conv_block_forward.1} parent=5 // pred_check
      _
    $region30: #{conv_block_forward.1} parent=5 // pred_check_branch
      %141 = sbr.rel (%p138) target = $region32
    $region31: #{conv_block_forward.1} parent=5 // pred_region
      %s142 = ssub.s32 %s9, 1
      %p143 = scmp.lt.s32.totalorder %s14, 1
      %s144 = scalar_select %p143, %s14, 1
      %s145 = smul.addr %s144, 3
      %s146 = smul.addr %s145, 4
      %s147 = scalar_lea.vmem %s0, %s146
      %p148 = pneg %p35
      %p149 = pneg %p32
      %p150 = pneg %p56
      %p151 = pneg %p53
      %p152 = pneg %p77
      %p153 = pneg %p74
      %p154 = pneg %p103
      %p155 = pneg %p100
      %s156 = smul.u32 2, %s14
      %p157 = scmp.lt.s32.totalorder %s156, 3
      %s158 = scalar_select %p157, %s156, 3
      %s159 = smul.addr %s158, 8
      %s160 = scalar_lea.vmem %s3, %s159
      %p161 = scmp.lt.s32.totalorder %s14, 1
      %s162 = scalar_select %p161, %s14, 1
      %s163 = smul.addr %s162, 3
      %s164 = smul.addr %s163, 4
      %s165 = scalar_lea.vmem %s0, %s164
      %s166 = smul.u32 2, %s14
      %p167 = scmp.lt.s32.totalorder %s166, 3
      %s168 = scalar_select %p167, %s166, 3
      %s169 = smul.addr %s168, 8
      %s170 = scalar_lea.vmem %s3, %s169
      %s171 = smul.u32 2, %s14
      %v173 = vld [vmem:[%s165] sm:$0xf]
      %v174 = vld [vmem:[%s165 + $0x4] sm:$0xf]
      %v175 = vld [vmem:[%s165 + $0x8] sm:$0x3]
      %v176 = vld [vmem:[%s1] sm:$0xf]
      %v177 = vld [vmem:[%s1 + $0x4] sm:$0xf]
      %v178 = vld [vmem:[%s1 + $0x8] sm:$0xf]
      %v179 = vld [vmem:[%s1 + $0xc] sm:$0xf]
      %v180 = vld [vmem:[%s1 + $0x10] sm:$0xf]
      %v181 = vld [vmem:[%s1 + $0x14] sm:$0xf]
      %v182 = vld [vmem:[%s1 + $0x18] sm:$0xf]
      %v183 = vld [vmem:[%s1 + $0x1c] sm:$0xf]
      %v184 = vld [vmem:[%s1 + $0x20] sm:$0xf]
      %v185 = vld [vmem:[%s1 + $0x24] sm:$0xf]
      %s186 = scalar_lea.vmem %s1, 40
      %v187 = vld [vmem:[%s186] sm:$0xf]
      %v188 = vld [vmem:[%s186 + $0x4] sm:$0xf]
      %v189 = vld [vmem:[%s186 + $0x8] sm:$0xf]
      %v190 = vld [vmem:[%s186 + $0xc] sm:$0xf]
      %v191 = vld [vmem:[%s186 + $0x10] sm:$0xf]
      %v192 = vld [vmem:[%s186 + $0x14] sm:$0xf]
      %v193 = vld [vmem:[%s186 + $0x18] sm:$0xf]
      %v194 = vld [vmem:[%s186 + $0x1c] sm:$0xf]
      %v195 = vld [vmem:[%s186 + $0x20] sm:$0xf]
      %v196 = vld [vmem:[%s186 + $0x24] sm:$0xf]
      %v200 = vunpack.c.l.b16 %v173
      %v201 = vunpack.c.l.b16 %v174
      %v202 = vunpack.c.l.b16 %v175
      %v203 = vpack.c.b16 %v201, %v200
      %v204 = vpack.c.b16 %v202, %v202
      %vm205 = vcmask 1046528
      %v206 = vrot.slane %v203, 1
      %v207 = vrot.slane %v204, 1
      %v208 = vsel %vm205, %v206, %v207
      %v219 = vunpack.c.l.b16 %v187
      %v220 = vunpack.c.l.b16 %v188
      %v221 = vunpack.c.l.b16 %v189
      %v222 = vunpack.c.l.b16 %v190
      %v223 = vunpack.c.l.b16 %v191
      %v224 = vunpack.c.l.b16 %v192
      %v225 = vunpack.c.l.b16 %v193
      %v226 = vunpack.c.l.b16 %v194
      %v227 = vunpack.c.l.b16 %v195
      %v228 = vunpack.c.l.b16 %v196
      %v229 = vpack.c.b16 %v220, %v219
      %v230 = vpack.c.b16 %v222, %v221
      %v231 = vpack.c.b16 %v224, %v223
      %v232 = vpack.c.b16 %v226, %v225
      %v233 = vpack.c.b16 %v228, %v227
      %vm239 = vcmask 654336
      %v241 = vsel %vm239, %v208, 0
      %243 = vmatprep.subr.bf16.mxu0 0
      %244 = vmatpush1.bf16.msra.mxu0 %v229
      %245 = vmatprep.subr.bf16.mxu0 0
      %246 = vmatpush1.bf16.msra.mxu0 %v230
      %247 = vmatprep.subr.bf16.mxu0 0
      %248 = vmatpush1.bf16.msra.mxu0 %v231
      %249 = vmatprep.subr.bf16.mxu0 0
      %250 = vmatpush1.bf16.msra.mxu0 %v232
      %251 = vmatprep.subr.bf16.mxu0 0
      %252 = vmatpush1.bf16.msra.mxu0 %v233
      %253 = vmatprep.subr.bf16.mxu0 0
      %254 = vmatpush1.bf16.msra.mxu0 0
      %255 = vmatprep.subr.bf16.mxu0 0
      %256 = vmatpush1.bf16.msra.mxu0 0
      %257 = vmatprep.subr.bf16.mxu0 0
      %258 = vmatpush1.bf16.msra.mxu0 0
      %259 = vmatprep.subr.bf16.mxu0 0
      %260 = vmatpush1.bf16.msra.mxu0 0
      %261 = vmatprep.subr.bf16.mxu0 0
      %262 = vmatpush1.bf16.msra.mxu0 0
      %263 = vmatprep.subr.bf16.mxu0 0
      %264 = vmatpush1.bf16.msra.mxu0 0
      %265 = vmatprep.subr.bf16.mxu0 0
      %266 = vmatpush1.bf16.msra.mxu0 0
      %267 = vmatprep.subr.bf16.mxu0 0
      %268 = vmatpush1.bf16.msra.mxu0 0
      %269 = vmatprep.subr.bf16.mxu0 0
      %270 = vmatpush1.bf16.msra.mxu0 0
      %271 = vmatprep.subr.bf16.mxu0 0
      %272 = vmatpush1.bf16.msra.mxu0 0
      %273 = vmatprep.subr.bf16.mxu0 0
      %274 = vmatpush1.bf16.msra.mxu0 0
      %275 = vmatprep.mubr.bf16.mxu0 0
      %276 = vmatmul.mubr.bf16.gmra.mrb[0].mxu0 %v241
      %v277 = vpop.f32.mrb[0].mxu0
      %v278 = vadd.f32 0.0, %v277
      %v279 = vpop.f32.mrb[0].mxu0
      %v280 = vpop.f32.mrb[0].mxu0
      %v281 = vadd.f32 0.0, %v280
      %v282 = vpop.f32.mrb[0].mxu0
      %283 = vdwg.mxu0
      %v294 = vunpack.c.l.b16 %v176
      %v295 = vunpack.c.l.b16 %v177
      %v296 = vunpack.c.l.b16 %v178
      %v297 = vunpack.c.l.b16 %v179
      %v298 = vunpack.c.l.b16 %v180
      %v299 = vunpack.c.l.b16 %v181
      %v300 = vunpack.c.l.b16 %v182
      %v301 = vunpack.c.l.b16 %v183
      %v302 = vunpack.c.l.b16 %v184
      %v303 = vunpack.c.l.b16 %v185
      %v304 = vpack.c.b16 %v295, %v294
      %v305 = vpack.c.b16 %v297, %v296
      %v306 = vpack.c.b16 %v299, %v298
      %v307 = vpack.c.b16 %v301, %v300
      %v308 = vpack.c.b16 %v303, %v302
      %v315 = vsel %vm239, %v203, 0
      %317 = vmatprep.subr.bf16.mxu0 0
      %318 = vmatpush1.bf16.msra.mxu0 %v304
      %319 = vmatprep.subr.bf16.mxu0 0
      %320 = vmatpush1.bf16.msra.mxu0 %v305
      %321 = vmatprep.subr.bf16.mxu0 0
      %322 = vmatpush1.bf16.msra.mxu0 %v306
      %323 = vmatprep.subr.bf16.mxu0 0
      %324 = vmatpush1.bf16.msra.mxu0 %v307
      %325 = vmatprep.subr.bf16.mxu0 0
      %326 = vmatpush1.bf16.msra.mxu0 %v308
      %327 = vmatprep.subr.bf16.mxu0 0
      %328 = vmatpush1.bf16.msra.mxu0 0
      %329 = vmatprep.subr.bf16.mxu0 0
      %330 = vmatpush1.bf16.msra.mxu0 0
      %331 = vmatprep.subr.bf16.mxu0 0
      %332 = vmatpush1.bf16.msra.mxu0 0
      %333 = vmatprep.subr.bf16.mxu0 0
      %334 = vmatpush1.bf16.msra.mxu0 0
      %335 = vmatprep.subr.bf16.mxu0 0
      %336 = vmatpush1.bf16.msra.mxu0 0
      %337 = vmatprep.subr.bf16.mxu0 0
      %338 = vmatpush1.bf16.msra.mxu0 0
      %339 = vmatprep.subr.bf16.mxu0 0
      %340 = vmatpush1.bf16.msra.mxu0 0
      %341 = vmatprep.subr.bf16.mxu0 0
      %342 = vmatpush1.bf16.msra.mxu0 0
      %343 = vmatprep.subr.bf16.mxu0 0
      %344 = vmatpush1.bf16.msra.mxu0 0
      %345 = vmatprep.subr.bf16.mxu0 0
      %346 = vmatpush1.bf16.msra.mxu0 0
      %347 = vmatprep.subr.bf16.mxu0 0
      %348 = vmatpush1.bf16.msra.mxu0 0
      %349 = vmatprep.mubr.bf16.mxu0 0
      %350 = vmatmul.mubr.bf16.gmra.mrb[0].mxu0 %v315
      %v351 = vpop.f32.mrb[0].mxu0
      %v352 = vadd.f32 %v278, %v351
      %v353 = vpop.f32.mrb[0].mxu0
      %v354 = vpop.f32.mrb[0].mxu0
      %v355 = vadd.f32 %v281, %v354
      %v356 = vpop.f32.mrb[0].mxu0
      %357 = vdwg.mxu0
      %s358 = scalar_lea.vmem %s1, 80
      %v359 = vld [vmem:[%s358] sm:$0xf]
      %v360 = vld [vmem:[%s358 + $0x4] sm:$0xf]
      %v361 = vld [vmem:[%s358 + $0x8] sm:$0xf]
      %v362 = vld [vmem:[%s358 + $0xc] sm:$0xf]
      %v363 = vld [vmem:[%s358 + $0x10] sm:$0xf]
      %v364 = vld [vmem:[%s358 + $0x14] sm:$0xf]
      %v365 = vld [vmem:[%s358 + $0x18] sm:$0xf]
      %v366 = vld [vmem:[%s358 + $0x1c] sm:$0xf]
      %v367 = vld [vmem:[%s358 + $0x20] sm:$0xf]
      %v368 = vld [vmem:[%s358 + $0x24] sm:$0xf]
      %vm369 = vcmask 1045504
      %v370 = vrot.slane %v203, 2
      %v371 = vrot.slane %v204, 2
      %v372 = vsel %vm369, %v370, %v371
      %v383 = vunpack.c.l.b16 %v359
      %v384 = vunpack.c.l.b16 %v360
      %v385 = vunpack.c.l.b16 %v361
      %v386 = vunpack.c.l.b16 %v362
      %v387 = vunpack.c.l.b16 %v363
      %v388 = vunpack.c.l.b16 %v364
      %v389 = vunpack.c.l.b16 %v365
      %v390 = vunpack.c.l.b16 %v366
      %v391 = vunpack.c.l.b16 %v367
      %v392 = vunpack.c.l.b16 %v368
      %v393 = vpack.c.b16 %v384, %v383
      %v394 = vpack.c.b16 %v386, %v385
      %v395 = vpack.c.b16 %v388, %v387
      %v396 = vpack.c.b16 %v390, %v389
      %v397 = vpack.c.b16 %v392, %v391
      %v404 = vsel %vm239, %v372, 0
      %406 = vmatprep.subr.bf16.mxu0 0
      %407 = vmatpush1.bf16.msra.mxu0 %v393
      %408 = vmatprep.subr.bf16.mxu0 0
      %409 = vmatpush1.bf16.msra.mxu0 %v394
      %410 = vmatprep.subr.bf16.mxu0 0
      %411 = vmatpush1.bf16.msra.mxu0 %v395
      %412 = vmatprep.subr.bf16.mxu0 0
      %413 = vmatpush1.bf16.msra.mxu0 %v396
      %414 = vmatprep.subr.bf16.mxu0 0
      %415 = vmatpush1.bf16.msra.mxu0 %v397
      %416 = vmatprep.subr.bf16.mxu0 0
      %417 = vmatpush1.bf16.msra.mxu0 0
      %418 = vmatprep.subr.bf16.mxu0 0
      %419 = vmatpush1.bf16.msra.mxu0 0
      %420 = vmatprep.subr.bf16.mxu0 0
      %421 = vmatpush1.bf16.msra.mxu0 0
      %422 = vmatprep.subr.bf16.mxu0 0
      %423 = vmatpush1.bf16.msra.mxu0 0
      %424 = vmatprep.subr.bf16.mxu0 0
      %425 = vmatpush1.bf16.msra.mxu0 0
      %426 = vmatprep.subr.bf16.mxu0 0
      %427 = vmatpush1.bf16.msra.mxu0 0
      %428 = vmatprep.subr.bf16.mxu0 0
      %429 = vmatpush1.bf16.msra.mxu0 0
      %430 = vmatprep.subr.bf16.mxu0 0
      %431 = vmatpush1.bf16.msra.mxu0 0
      %432 = vmatprep.subr.bf16.mxu0 0
      %433 = vmatpush1.bf16.msra.mxu0 0
      %434 = vmatprep.subr.bf16.mxu0 0
      %435 = vmatpush1.bf16.msra.mxu0 0
      %436 = vmatprep.subr.bf16.mxu0 0
      %437 = vmatpush1.bf16.msra.mxu0 0
      %438 = vmatprep.mubr.bf16.mxu0 0
      %439 = vmatmul.mubr.bf16.gmra.mrb[0].mxu0 %v404
      %v440 = vpop.f32.mrb[0].mxu0
      %v441 = vadd.f32 0.0, %v440
      %v442 = vpop.f32.mrb[0].mxu0
      %v443 = vpop.f32.mrb[0].mxu0
      %v444 = vadd.f32 0.0, %v443
      %v445 = vpop.f32.mrb[0].mxu0
      %446 = vdwg.mxu0
      %v447 = vadd.f32 %v352, %v441
      %v448 = vadd.f32 %v355, %v444
      %v449 = vld [vmem:[%s2] sm:$0x1]
      %v451 = vlaneseq
      %v452 = vshrl.u32 %v451, 7
      %v453 = vsub.s32 0, %v452
      %v454 = vrot.slane %v449, %v453
      %v456 = vadd.f32 %v447, %v454
      %v457 = vadd.f32 %v448, %v454
      %vm458 = vcmp.gt.f32.partialorder %v456, 0.0
      %vm459 = vcmp.gt.f32.partialorder %v457, 0.0
      %v460 = vmul.f32 %v456, 0.2
      %v461 = vmul.f32 %v457, 0.2
      %v462 = vsel %vm458, %v456, %v460
      %v463 = vsel %vm459, %v457, %v461
      %464 = vst [vmem:[%s170] sm:$0xff] %v462
      %465 = vst [vmem:[%s170 + $0x8] sm:$0xff] %v463
      %s466 = smul.u32 2, %s14
      %p467 = scmp.lt.s32.totalorder %s466, 3
      %s468 = scalar_select %p467, %s466, 3
      %s469 = smul.addr %s468, 8
      %s470 = scalar_lea.vmem %s3, %s469
      // Predicated region
      $region33: #{conv_block_forward.1} parent=31 // pred_check
        %p471 = pneg %p100
      $region34: #{conv_block_forward.1} parent=31 // pred_check_branch
        %473 = sbr.rel (%p471) target = $region36
      $region35: #{conv_block_forward.1} parent=31 // pred_region
        %s474 = smul.u32 2, %s14
      $region36: #{conv_block_forward.1} parent=31 // pred_fallthru
        _
    $region32: #{conv_block_forward.1} parent=5 // pred_fallthru
      _
    %p475 = scmp.le.s32.totalorder 2, %s9
    // Predicated region
    $region37: #{conv_block_forward.1} parent=5 // pred_check
      %p476 = pneg %p475
    $region38: #{conv_block_forward.1} parent=5 // pred_check_branch
      %478 = sbr.rel (%p476) target = $region40
    $region39: #{conv_block_forward.1} parent=5 // pred_region
      %s479 = ssub.s32 %s9, 2
      // Predicated region
      $region41: #{conv_block_forward.1} parent=39 // pred_check
        %p480 = pneg %p106
      $region42: #{conv_block_forward.1} parent=39 // pred_check_branch
        %482 = sbr.rel (%p480) target = $region44
      $region43: #{conv_block_forward.1} parent=39 // pred_region
        %s483 = smul.u32 2, %s15
        %p484 = scmp.lt.s32.totalorder %s483, 3
        %s485 = scalar_select %p484, %s483, 3
        %s486 = smul.addr %s485, 8
        %s487 = scalar_lea.vmem %s3, %s486
      $region44: #{conv_block_forward.1} parent=39 // pred_fallthru
        _
    $region40: #{conv_block_forward.1} parent=5 // pred_fallthru
      _
  $region6: #{conv_block_forward.1} parent=0 // loop_footer
    %s13 = sadd.s32 1, %s9
  $region7: #{conv_block_forward.1} parent=0 // loop_footer_branch
    %8 = sbr.rel target = $region3
  $region8: #{conv_block_forward.1} parent=0 // loop_exit
    _

</llo_original>
